<compile_context>
chip_gen: v7x
topology: tpu7x:2x2x1
jax: 0.10.0
libtpu: 0.0.40
codegen_flags: <defaults>
</compile_context>

<pallas_src>
import math
import jax
import jax.numpy as jnp
from jax.experimental import pallas as pl
from jax.experimental.pallas import tpu as pltpu

_SUBLANE = 8
_LANE = 128


def _round_up(x, m):
    return ((x + m - 1) // m) * m


def _vmem_capacity_bytes():
    """Generation-aware VMEM capacity (v5e/v6e 128 MiB, v7x 64 MiB per TC)."""
    try:
        cap = getattr(pltpu.get_tpu_info(), "vmem_capacity_bytes", None)
        if cap:
            return int(cap)
    except Exception:
        pass
    return 64 * 1024 * 1024  # conservative default (v7x per-TensorCore VMEM)


def _pick_feature_tile(d):
    """Largest of {512,256,128} dividing d (avoids partial K tiles), else full d."""
    for c in (512, 256, 128):
        if d % c == 0:
            return c
    return d


def _pick_row_tile(m, d_in, d_out, itemsize, budget_bytes, max_row_tile=None):
    """Byte-capped row tile TM (multiple of 8 sublanes) for the resident path."""
    # Per grid step: double-buffered x tile + out tile, plus the f32 matmul
    # intermediate (TM, d_out) produced before the cast/store.
    per_row = 2 * (d_in + d_out) * itemsize + d_out * 4
    tm = budget_bytes // max(per_row, 1)
    tm = max(_SUBLANE, (tm // _SUBLANE) * _SUBLANE)
    tm = min(tm, 16384)  # cap by bytes, not by an arbitrary 1024-row limit
    if max_row_tile is not None:
        tm = min(tm, max(_SUBLANE, (max_row_tile // _SUBLANE) * _SUBLANE))
    if m <= tm:
        tm = max(_SUBLANE, _round_up(m, _SUBLANE))
    return tm


def _lin_tanh_resident_kernel(x_ref, w_ref, b_ref, o_ref):
    # Plain (1,0) contraction: x (TM, D_in) @ W^T-pre-transposed (D_in, D_out).
    y = jnp.dot(x_ref[...], w_ref[...], preferred_element_type=jnp.float32)
    y = y + b_ref[...]                              # (TM, D_out) + (1, D_out)
    o_ref[...] = jnp.tanh(y).astype(o_ref.dtype)    # tanh runs on the EUP


def _lin_tanh_tiled_kernel(x_ref, w_ref, b_ref, o_ref, acc_ref):
    k = pl.program_id(2)

    @pl.when(k == 0)
    def _():
        acc_ref[...] = jnp.zeros_like(acc_ref)

    acc_ref[...] += jnp.dot(x_ref[...], w_ref[...],
                            preferred_element_type=jnp.float32)

    @pl.when(k == pl.num_programs(2) - 1)
    def _():
        y = acc_ref[...] + b_ref[...]
        o_ref[...] = jnp.tanh(y).astype(o_ref.dtype)


def lin_tanh(x, weight, bias, *, force_tiled=False, max_row_tile=None):
    """tanh(x @ weight.T + bias).

    x: (..., d_in); weight: (d_out, d_in) (PyTorch nn.Linear convention);
    bias: (d_out,).  Returns (..., d_out).
    """
    orig_lead = x.shape[:-1]
    d_in = x.shape[-1]
    d_out, d_in_w = weight.shape
    assert d_in == d_in_w, "weight/in-feature mismatch"

    x2 = x.reshape(-1, d_in)                 # (M, D_in), features on the lane axis
    M = x2.shape[0]
    # One-time wrapper-side transpose -> kernel uses a plain (1,0) contraction,
    # avoiding any per-grid-step XLU relayout of the resident weight.
    w_t = weight.T                           # (D_in, D_out)
    b2 = bias.reshape(1, d_out)              # 2-D for clean lane broadcast

    itemsize = jnp.dtype(x.dtype).itemsize
    cap = _vmem_capacity_bytes()
    budget = int(cap * 0.7)                  # leave headroom for compiler scratch

    weight_bytes = d_in * d_out * itemsize
    bias_bytes = _round_up(d_out, _LANE) * itemsize
    use_tiled = force_tiled or (weight_bytes > budget // 4)

    cost = pl.CostEstimate(
        flops=2 * M * d_in * d_out,
        transcendentals=M * d_out,
        bytes_accessed=(M * d_in + d_in * d_out + d_out + M * d_out) * itemsize,
    )

    if not use_tiled:
        # ---------------- resident-weight path (mem-bound regime) -----------
        tm = _pick_row_tile(M, d_in, d_out, itemsize,
                            budget - weight_bytes - bias_bytes,
                            max_row_tile=max_row_tile)
        grid = (pl.cdiv(M, tm),)
        footprint = (2 * tm * d_in * itemsize      # double-buffered x tiles
                     + 2 * tm * d_out * itemsize   # double-buffered out tiles
                     + tm * d_out * 4              # f32 epilogue intermediate
                     + weight_bytes + bias_bytes)  # resident (single-buffered)
        vmem_limit = int(min(cap, max(footprint * 2, 32 * 1024 * 1024)))

        def _call(single_buffer_consts):
            # Constant-index operands don't need double buffers.
            const_kw = ({"pipeline_mode": pl.Buffered(1)}
                        if single_buffer_consts else {})
            return pl.pallas_call(
                _lin_tanh_resident_kernel,
                out_shape=jax.ShapeDtypeStruct((M, d_out), x.dtype),
                grid_spec=pltpu.PrefetchScalarGridSpec(
                    num_scalar_prefetch=0,
                    grid=grid,
                    in_specs=[
                        pl.BlockSpec((tm, d_in), lambda i: (i, 0)),   # x row tile
                        pl.BlockSpec((d_in, d_out), lambda i: (0, 0), **const_kw),
                        pl.BlockSpec((1, d_out), lambda i: (0, 0), **const_kw),
                    ],
                    out_specs=pl.BlockSpec((tm, d_out), lambda i: (i, 0)),
                ),
                # Row tiles are independent; "parallel" lets v7x shard across
                # its 2 TensorCores (neutral on single-TC v5e/v6e).
                compiler_params=pltpu.CompilerParams(
                    dimension_semantics=("parallel",),
                    vmem_limit_bytes=vmem_limit,
                ),
                cost_estimate=cost,
            )(x2, w_t, b2)

        try:
            out = _call(True)
        except Exception:
            # pl.Buffered(1) unsupported on this jax build: fall back to the
            # default (double-buffered, still fetched once) resident weight.
            out = _call(False)
    else:
        # ---------------- K/N-tiled accumulator path (large d_model) --------
        tk = _pick_feature_tile(d_in)
        tn = _pick_feature_tile(d_out)
        per_row = 2 * tk * itemsize + 2 * tn * itemsize + tn * 4
        w_tile_bytes = 2 * tk * tn * itemsize
        b_tile_bytes = 2 * tn * itemsize
        tm = (budget - w_tile_bytes - b_tile_bytes) // max(per_row, 1)
        tm = max(_SUBLANE, min(1024, (tm // _SUBLANE) * _SUBLANE))
        if max_row_tile is not None:
            tm = min(tm, max(_SUBLANE, (max_row_tile // _SUBLANE) * _SUBLANE))
        if M <= tm:
            tm = max(_SUBLANE, _round_up(M, _SUBLANE))
        grid = (pl.cdiv(M, tm), pl.cdiv(d_out, tn), pl.cdiv(d_in, tk))
        footprint = (2 * tm * tk * itemsize + w_tile_bytes + b_tile_bytes
                     + 2 * tm * tn * itemsize + tm * tn * 4)
        vmem_limit = int(min(cap, max(footprint * 2, 32 * 1024 * 1024)))

        out = pl.pallas_call(
            _lin_tanh_tiled_kernel,
            out_shape=jax.ShapeDtypeStruct((M, d_out), x.dtype),
            grid_spec=pltpu.PrefetchScalarGridSpec(
                num_scalar_prefetch=0,
                grid=grid,
                in_specs=[
                    pl.BlockSpec((tm, tk), lambda i, j, k: (i, k)),
                    pl.BlockSpec((tk, tn), lambda i, j, k: (k, j)),
                    pl.BlockSpec((1, tn), lambda i, j, k: (0, j)),
                ],
                out_specs=pl.BlockSpec((tm, tn), lambda i, j, k: (i, j)),
                scratch_shapes=[pltpu.VMEM((tm, tn), jnp.float32)],
            ),
            compiler_params=pltpu.CompilerParams(
                dimension_semantics=("parallel", "parallel", "arbitrary"),
                vmem_limit_bytes=vmem_limit,
            ),
            cost_estimate=cost,
        )(x2, w_t, b2)

    return out.reshape(*orig_lead, d_out)


if __name__ == "__main__":
    # Small shapes consistent with the module's forward: (batch, seq, d_model).
    batch, seq, d_model = 2, 8, 32

    key = jax.random.PRNGKey(0)
    kx, kw, kb = jax.random.split(key, 3)

    x = jax.random.normal(kx, (batch, seq, d_model), dtype=jnp.float32)

    # Deterministic params mimicking nn.Linear default init: U(-1/sqrt(D), 1/sqrt(D)).
    bound = 1.0 / math.sqrt(d_model)
    weight = jax.random.uniform(kw, (d_model, d_model),
                                minval=-bound, maxval=bound, dtype=jnp.float32)
    bias = jax.random.uniform(kb, (d_model,),
                              minval=-bound, maxval=bound, dtype=jnp.float32)

    out = jax.block_until_ready(lin_tanh(x, weight, bias))
    ref = jnp.tanh(x @ weight.T + bias)
    assert out.shape == ref.shape
    assert jnp.allclose(out, ref, atol=1e-5, rtol=1e-5)

    # Multi-step resident path: cap the row tile so the grid has several steps.
    xb = jax.random.normal(kx, (4, 300, d_model), dtype=jnp.float32)
    outb = jax.block_until_ready(lin_tanh(xb, weight, bias, max_row_tile=128))
    refb = jnp.tanh(xb @ weight.T + bias)
    assert jnp.allclose(outb, refb, atol=1e-5, rtol=1e-5)

    # K/N-tiled accumulator path (the large-d_model / v7x regime), forced at a
    # small d_model so it is exercised here: grid (1, 3, 3) with 128x128 tiles.
    d_big = 384
    kw2, kb2, kx2 = jax.random.split(jax.random.PRNGKey(1), 3)
    bound2 = 1.0 / math.sqrt(d_big)
    w_big = jax.random.uniform(kw2, (d_big, d_big),
                               minval=-bound2, maxval=bound2, dtype=jnp.float32)
    b_big = jax.random.uniform(kb2, (d_big,),
                               minval=-bound2, maxval=bound2, dtype=jnp.float32)
    x_big = jax.random.normal(kx2, (batch, seq, d_big), dtype=jnp.float32)
    out_big = jax.block_until_ready(lin_tanh(x_big, w_big, b_big, force_tiled=True))
    ref_big = jnp.tanh(x_big @ w_big.T + b_big)
    assert jnp.allclose(out_big, ref_big, atol=1e-5, rtol=1e-5)

    print("KERNEL_OK")
</pallas_src>

<mosaic_0001>
module attributes {stable_mosaic.version = 11 : i64} {
  func.func @_lin_tanh_resident_kernel(%arg0: i32, %arg1: memref<16x32xf32, #tpu.memory_space<vmem>>, %arg2: memref<32x32xf32, #tpu.memory_space<vmem>>, %arg3: memref<1x32xf32, #tpu.memory_space<vmem>>, %arg4: memref<16x32xf32, #tpu.memory_space<vmem>>) attributes {dimension_semantics = [#tpu.dimension_semantics<parallel>], iteration_bounds = array<i64: 1>, scalar_prefetch = 0 : i64, scratch_operands = 0 : i64, tpu.core_type = #tpu.core_type<tc>, window_params = [{transform_indices = @transform_0, window_bounds = array<i64: 16, 32>}, {pipeline_mode = #tpu.pipeline_mode<synchronous>, transform_indices = @transform_1, window_bounds = array<i64: 32, 32>}, {pipeline_mode = #tpu.pipeline_mode<synchronous>, transform_indices = @transform_2, window_bounds = array<i64: 1, 32>}, {transform_indices = @transform_3, window_bounds = array<i64: 16, 32>}]} {
    %c0 = arith.constant 0 : index
    %c0_0 = arith.constant 0 : index
    %0 = vector.load %arg1[%c0, %c0_0] : memref<16x32xf32, #tpu.memory_space<vmem>>, vector<16x32xf32>
    %c0_1 = arith.constant 0 : index
    %c0_2 = arith.constant 0 : index
    %1 = vector.load %arg2[%c0_1, %c0_2] : memref<32x32xf32, #tpu.memory_space<vmem>>, vector<32x32xf32>
    %cst = arith.constant dense<0.000000e+00> : vector<16x32xf32>
    %2 = tpu.matmul %0, %1, %cst {dimension_numbers = #tpu.dot_dimension_numbers<[1], [0], [0], [1], [0, 0, 1, 1], [], []>} : vector<16x32xf32>, vector<32x32xf32>, vector<16x32xf32> -> vector<16x32xf32>
    %c0_3 = arith.constant 0 : index
    %c0_4 = arith.constant 0 : index
    %3 = vector.load %arg3[%c0_3, %c0_4] : memref<1x32xf32, #tpu.memory_space<vmem>>, vector<1x32xf32>
    %4 = vector.broadcast %3 : vector<1x32xf32> to vector<16x32xf32>
    %5 = arith.addf %2, %4 : vector<16x32xf32>
    %6 = math.tanh %5 : vector<16x32xf32>
    %c0_5 = arith.constant 0 : index
    %c0_6 = arith.constant 0 : index
    %7 = vector.load %arg4[%c0_5, %c0_6] : memref<16x32xf32, #tpu.memory_space<vmem>>, vector<16x32xf32>
    tpu.vector_store %arg4[%c0_5, %c0_6], %6 {strides = array<i32>} : memref<16x32xf32, #tpu.memory_space<vmem>>, vector<16x32xf32>,
    return
  }
  func.func @transform_0(%arg0: i32) -> (i32, i32) {
    %c0_i32 = arith.constant 0 : i32
    %c0_i32_0 = arith.constant 0 : i32
    return %arg0, %c0_i32 : i32, i32
  }
  func.func @transform_1(%arg0: i32) -> (i32, i32) {
    %c0_i32 = arith.constant 0 : i32
    %c0_i32_0 = arith.constant 0 : i32
    %c0_i32_1 = arith.constant 0 : i32
    return %c0_i32, %c0_i32_0 : i32, i32
  }
  func.func @transform_2(%arg0: i32) -> (i32, i32) {
    %c0_i32 = arith.constant 0 : i32
    %c0_i32_0 = arith.constant 0 : i32
    %c0_i32_1 = arith.constant 0 : i32
    return %c0_i32, %c0_i32_0 : i32, i32
  }
  func.func @transform_3(%arg0: i32) -> (i32, i32) {
    %c0_i32 = arith.constant 0 : i32
    %c0_i32_0 = arith.constant 0 : i32
    return %arg0, %c0_i32 : i32, i32
  }
}

module attributes {stable_mosaic.version = 11 : i64} {
  func.func @_lin_tanh_resident_kernel(%arg0: i32, %arg1: memref<16x32xf32, #tpu.memory_space<vmem>>, %arg2: memref<32x32xf32, #tpu.memory_space<vmem>>, %arg3: memref<1x32xf32, #tpu.memory_space<vmem>>, %arg4: memref<16x32xf32, #tpu.memory_space<vmem>>) attributes {dimension_semantics = [#tpu.dimension_semantics<parallel>], iteration_bounds = array<i64: 1>, scalar_prefetch = 0 : i64, scratch_operands = 0 : i64, tpu.core_type = #tpu.core_type<tc>, window_params = [{transform_indices = @transform_0, window_bounds = array<i64: 16, 32>}, {pipeline_mode = #tpu.pipeline_mode<synchronous>, transform_indices = @transform_1, window_bounds = array<i64: 32, 32>}, {pipeline_mode = #tpu.pipeline_mode<synchronous>, transform_indices = @transform_2, window_bounds = array<i64: 1, 32>}, {transform_indices = @transform_3, window_bounds = array<i64: 16, 32>}]} {
    %c0 = arith.constant 0 : index
    %c0_0 = arith.constant 0 : index
    %0 = vector.load %arg1[%c0, %c0_0] : memref<16x32xf32, #tpu.memory_space<vmem>>, vector<16x32xf32>
    %c0_1 = arith.constant 0 : index
    %c0_2 = arith.constant 0 : index
    %1 = vector.load %arg2[%c0_1, %c0_2] : memref<32x32xf32, #tpu.memory_space<vmem>>, vector<32x32xf32>
    %cst = arith.constant dense<0.000000e+00> : vector<16x32xf32>
    %2 = tpu.matmul %0, %1, %cst {dimension_numbers = #tpu.dot_dimension_numbers<[1], [0], [0], [1], [0, 0, 1, 1], [], []>} : vector<16x32xf32>, vector<32x32xf32>, vector<16x32xf32> -> vector<16x32xf32>
    %c0_3 = arith.constant 0 : index
    %c0_4 = arith.constant 0 : index
    %3 = vector.load %arg3[%c0_3, %c0_4] : memref<1x32xf32, #tpu.memory_space<vmem>>, vector<1x32xf32>
    %4 = vector.broadcast %3 : vector<1x32xf32> to vector<16x32xf32>
    %5 = arith.addf %2, %4 : vector<16x32xf32>
    %6 = math.tanh %5 : vector<16x32xf32>
    %c0_5 = arith.constant 0 : index
    %c0_6 = arith.constant 0 : index
    %7 = vector.load %arg4[%c0_5, %c0_6] : memref<16x32xf32, #tpu.memory_space<vmem>>, vector<16x32xf32>
    tpu.vector_store %arg4[%c0_5, %c0_6], %6 {strides = array<i32>} : memref<16x32xf32, #tpu.memory_space<vmem>>, vector<16x32xf32>,
    return
  }
  func.func @transform_0(%arg0: i32) -> (i32, i32) {
    %c0_i32 = arith.constant 0 : i32
    %c0_i32_0 = arith.constant 0 : i32
    return %arg0, %c0_i32 : i32, i32
  }
  func.func @transform_1(%arg0: i32) -> (i32, i32) {
    %c0_i32 = arith.constant 0 : i32
    %c0_i32_0 = arith.constant 0 : i32
    %c0_i32_1 = arith.constant 0 : i32
    return %c0_i32, %c0_i32_0 : i32, i32
  }
  func.func @transform_2(%arg0: i32) -> (i32, i32) {
    %c0_i32 = arith.constant 0 : i32
    %c0_i32_0 = arith.constant 0 : i32
    %c0_i32_1 = arith.constant 0 : i32
    return %c0_i32, %c0_i32_0 : i32, i32
  }
  func.func @transform_3(%arg0: i32) -> (i32, i32) {
    %c0_i32 = arith.constant 0 : i32
    %c0_i32_0 = arith.constant 0 : i32
    return %arg0, %c0_i32 : i32, i32
  }
}

</mosaic_0001>

<llo_original>
// kernel: tpu_custom_call.1
$region0: #{tpu_custom_call.1}
  #allocation0 [shape = 'u32[]', space=smem, size = 0x4, offset = 0x4, fixed_abs, tag = 'smem constant byte address 0x4 - core index']
  #allocation1 [shape = 'u32[144,128]{1,0:T(1,128)}', space=vmem, size = 0x12000, scoped, tag = 'internal scratch']
  %s0 = inlined_call_operand.hbm [shape: f32[16,32], index: 0, kind: input, shape index: {}]
  %s1 = inlined_call_operand.hbm [shape: f32[32,32], index: 1, kind: input, shape index: {}]
  %s2 = inlined_call_operand.vmem [shape: f32[1,32], index: 2, kind: input, shape index: {}]
  %s3 = inlined_call_operand.hbm [shape: f32[16,32], index: 3, kind: output, shape index: {}]
  %s4 = sld [smem:[#allocation0]]
  $region30: #{tpu_custom_call.1} parent=0
    _
  %s6 = ssub.s32 1, %s4
  %s7 = scalar_select 0, %s6, %s4
  $region1: #{tpu_custom_call.1} parent=0
    #allocation2 [shape = 'u8[8192]{0}', space=vmem, size = 0x2000, scoped, tag = 'input window, operand 0, single buffered']
    #allocation3 [shape = 's32[1]{0}', space=sflag, size = 0x4, scoped, tag = 'scoped memory for tpu_custom_call.1']
    #allocation4 [shape = 's32[1]{0}', space=sflag, size = 0x4, scoped, tag = 'scoped memory for tpu_custom_call.1']
    #allocation5 [shape = 'u8[16384]{0}', space=vmem, size = 0x4000, scoped, tag = 'input window, operand 1, single buffered']
    #allocation6 [shape = 's32[1]{0}', space=sflag, size = 0x4, scoped, tag = 'scoped memory for tpu_custom_call.1']
    #allocation7 [shape = 'u8[8192]{0}', space=vmem, size = 0x2000, scoped, tag = 'output window, operand 0, single buffered']
    %8 = vsyncpa [#allocation3], 0
    %9 = vsyncpa [#allocation6], 0
    %10 = vsyncpa [#allocation4], 0
    // Predicated region
    $region2: #{tpu_custom_call.1} parent=1 // pred_check
      _
    $region3: #{tpu_custom_call.1} parent=1 // pred_check_branch
      %12 = sbr.rel (0) target = $region5
    $region4: #{tpu_custom_call.1} parent=1 // pred_region
      %s14 = ssub.s32 256, 256
      %15 = vsyncadd [#allocation3], %s14
      %s16 = sshll.u32 [#allocation2], 4
      %s17 = int_to_ptr.vmem [resolvable:$true] %s16
      %22 = dma.hbm_to_vmem [thread:$0]  %s0, 256, %s17, [#allocation3], 128, 128, 8
    $region5: #{tpu_custom_call.1} parent=1 // pred_fallthru
      _
    // Predicated region
    $region6: #{tpu_custom_call.1} parent=1 // pred_check
      _
    $region7: #{tpu_custom_call.1} parent=1 // pred_check_branch
      %24 = sbr.rel (0) target = $region9
    $region8: #{tpu_custom_call.1} parent=1 // pred_region
      %s26 = ssub.s32 512, 512
      %27 = vsyncadd [#allocation6], %s26
      %s28 = sshll.u32 [#allocation5], 4
      %s29 = int_to_ptr.vmem [resolvable:$true] %s28
      %34 = dma.hbm_to_vmem [thread:$0]  %s1, 512, %s29, [#allocation6], 128, 128, 8
    $region9: #{tpu_custom_call.1} parent=1 // pred_fallthru
      _
    // Predicated region
    $region10: #{tpu_custom_call.1} parent=1 // pred_check
      _
    $region11: #{tpu_custom_call.1} parent=1 // pred_check_branch
      %36 = sbr.rel (0) target = $region13
    $region12: #{tpu_custom_call.1} parent=1 // pred_region
      _
    $region13: #{tpu_custom_call.1} parent=1 // pred_fallthru
      _
    // Predicated region
    $region14: #{tpu_custom_call.1} parent=1 // pred_check
      _
    $region15: #{tpu_custom_call.1} parent=1 // pred_check_branch
      %38 = sbr.rel (0) target = $region17
    $region16: #{tpu_custom_call.1} parent=1 // pred_region
      %39 = dma.done [#allocation3], 256
    $region17: #{tpu_custom_call.1} parent=1 // pred_fallthru
      _
    // Predicated region
    $region18: #{tpu_custom_call.1} parent=1 // pred_check
      _
    $region19: #{tpu_custom_call.1} parent=1 // pred_check_branch
      %41 = sbr.rel (0) target = $region21
    $region20: #{tpu_custom_call.1} parent=1 // pred_region
      %42 = dma.done [#allocation6], 512
    $region21: #{tpu_custom_call.1} parent=1 // pred_fallthru
      _
    %v43 = vld [vmem:[#allocation2] sm:$0xff]
    %v44 = vld [vmem:[#allocation2 + $0x8] sm:$0xff]
    %v45 = vld [vmem:[#allocation5] sm:$0xff]
    %v46 = vld [vmem:[#allocation5 + $0x8] sm:$0xff]
    %v47 = vld [vmem:[#allocation5 + $0x10] sm:$0xff]
    %v48 = vld [vmem:[#allocation5 + $0x18] sm:$0xff]
    %v49 = vld [vmem:[%s2] sm:$0x1]
    %v51 = vlaneseq
    %v52 = vshrl.u32 %v51, 7
    %v53 = vsub.s32 0, %v52
    %v54 = vrot.slane %v49, %v53
    %vm56 = vcmask 261120
    %v58 = vsel %vm56, %v43, 0
    %v61 = vsel %vm56, %v44, 0
    %63 = vmatprep.subr.mxu0 0.0
    %64 = vmatpush1.msra.mxu0 %v45
    %65 = vmatprep.subr.mxu0 0.0
    %66 = vmatpush1.msra.mxu0 %v46
    %67 = vmatprep.subr.mxu0 0.0
    %68 = vmatpush1.msra.mxu0 %v47
    %69 = vmatprep.subr.mxu0 0.0
    %70 = vmatpush1.msra.mxu0 %v48
    %71 = vmatprep.subr.mxu0 0.0
    %72 = vmatpush1.msra.mxu0 0.0
    %73 = vmatprep.subr.mxu0 0.0
    %74 = vmatpush1.msra.mxu0 0.0
    %75 = vmatprep.subr.mxu0 0.0
    %76 = vmatpush1.msra.mxu0 0.0
    %77 = vmatprep.subr.mxu0 0.0
    %78 = vmatpush1.msra.mxu0 0.0
    %79 = vmatprep.subr.mxu0 0.0
    %80 = vmatpush1.msra.mxu0 0.0
    %81 = vmatprep.subr.mxu0 0.0
    %82 = vmatpush1.msra.mxu0 0.0
    %83 = vmatprep.subr.mxu0 0.0
    %84 = vmatpush1.msra.mxu0 0.0
    %85 = vmatprep.subr.mxu0 0.0
    %86 = vmatpush1.msra.mxu0 0.0
    %87 = vmatprep.subr.mxu0 0.0
    %88 = vmatpush1.msra.mxu0 0.0
    %89 = vmatprep.subr.mxu0 0.0
    %90 = vmatpush1.msra.mxu0 0.0
    %91 = vmatprep.subr.mxu0 0.0
    %92 = vmatpush1.msra.mxu0 0.0
    %93 = vmatprep.subr.mxu0 0.0
    %94 = vmatpush1.msra.mxu0 0.0
    %95 = vmatprep.subr.mxu0 0.0
    %96 = vmatpush1.msra.mxu0 0.0
    %97 = vmatprep.subr.mxu0 0.0
    %98 = vmatpush1.msra.mxu0 0.0
    %99 = vmatprep.subr.mxu0 0.0
    %100 = vmatpush1.msra.mxu0 0.0
    %101 = vmatprep.subr.mxu0 0.0
    %102 = vmatpush1.msra.mxu0 0.0
    %103 = vmatprep.subr.mxu0 0.0
    %104 = vmatpush1.msra.mxu0 0.0
    %105 = vmatprep.subr.mxu0 0.0
    %106 = vmatpush1.msra.mxu0 0.0
    %107 = vmatprep.subr.mxu0 0.0
    %108 = vmatpush1.msra.mxu0 0.0
    %109 = vmatprep.subr.mxu0 0.0
    %110 = vmatpush1.msra.mxu0 0.0
    %111 = vmatprep.subr.mxu0 0.0
    %112 = vmatpush1.msra.mxu0 0.0
    %113 = vmatprep.subr.mxu0 0.0
    %114 = vmatpush1.msra.mxu0 0.0
    %115 = vmatprep.subr.mxu0 0.0
    %116 = vmatpush1.msra.mxu0 0.0
    %117 = vmatprep.subr.mxu0 0.0
    %118 = vmatpush1.msra.mxu0 0.0
    %119 = vmatprep.subr.mxu0 0.0
    %120 = vmatpush1.msra.mxu0 0.0
    %121 = vmatprep.subr.mxu0 0.0
    %122 = vmatpush1.msra.mxu0 0.0
    %123 = vmatprep.subr.mxu0 0.0
    %124 = vmatpush1.msra.mxu0 0.0
    %125 = vmatprep.subr.mxu0 0.0
    %126 = vmatpush1.msra.mxu0 0.0
    %127 = vmatprep.mubr.f32.mxu0 0.0
    %128 = vmatmul.mubr.f32.gmra.mrb[0].mxu0 %v58
    %v129 = vpop.f32.mrb[0].mxu0
    %v130 = vadd.f32 %v54, %v129
    %v131 = vpop.f32.mrb[0].mxu0
    %132 = vmatprep.mubr.f32.mxu0 0.0
    %133 = vmatmul.mubr.f32.gmra.mrb[0].mxu0 %v61
    %v134 = vpop.f32.mrb[0].mxu0
    %v135 = vadd.f32 %v54, %v134
    %v136 = vpop.f32.mrb[0].mxu0
    %137 = vdwg.mxu0
    %v138 = vtanh.pop %v130
    %v139 = vtanh.pop %v135
    %140 = vst.msk [vmem:[#allocation7] sm:$0xff] %vm56, %v138
    %141 = vst.msk [vmem:[#allocation7 + $0x8] sm:$0xff] %vm56, %v139
    // Predicated region
    $region22: #{tpu_custom_call.1} parent=1 // pred_check
      _
    $region23: #{tpu_custom_call.1} parent=1 // pred_check_branch
      %143 = sbr.rel (0) target = $region25
    $region24: #{tpu_custom_call.1} parent=1 // pred_region
      %s145 = ssub.s32 256, 256
      %146 = vsyncadd [#allocation4], %s145
      %s147 = sshll.u32 [#allocation7], 4
      %s148 = int_to_ptr.vmem [resolvable:$true] %s147
      %153 = dma.vmem_to_hbm [thread:$0]  %s148, 256, %s3, [#allocation4], 128, 128, 8
    $region25: #{tpu_custom_call.1} parent=1 // pred_fallthru
      _
    // Predicated region
    $region26: #{tpu_custom_call.1} parent=1 // pred_check
      _
    $region27: #{tpu_custom_call.1} parent=1 // pred_check_branch
      %155 = sbr.rel (0) target = $region29
    $region28: #{tpu_custom_call.1} parent=1 // pred_region
      %156 = dma.done [#allocation4], 256
    $region29: #{tpu_custom_call.1} parent=1 // pred_fallthru
      _
    %157 = vsyncpa [#allocation3], 1
    %158 = vsyncpa [#allocation6], 1
    %159 = vsyncpa [#allocation4], 1

// kernel: tpu_custom_call.1
$region0: #{tpu_custom_call.1}
  #allocation0 [shape = 'u32[]', space=smem, size = 0x4, offset = 0x4, fixed_abs, tag = 'smem constant byte address 0x4 - core index']
  #allocation1 [shape = 'u32[144,128]{1,0:T(1,128)}', space=vmem, size = 0x12000, scoped, tag = 'internal scratch']
  %s0 = inlined_call_operand.hbm [shape: f32[16,32], index: 0, kind: input, shape index: {}]
  %s1 = inlined_call_operand.hbm [shape: f32[32,32], index: 1, kind: input, shape index: {}]
  %s2 = inlined_call_operand.vmem [shape: f32[1,32], index: 2, kind: input, shape index: {}]
  %s3 = inlined_call_operand.hbm [shape: f32[16,32], index: 3, kind: output, shape index: {}]
  %s4 = sld [smem:[#allocation0]]
  $region30: #{tpu_custom_call.1} parent=0
    _
  %s6 = ssub.s32 1, %s4
  %s7 = scalar_select 0, %s6, %s4
  $region1: #{tpu_custom_call.1} parent=0
    #allocation2 [shape = 'u8[8192]{0}', space=vmem, size = 0x2000, scoped, tag = 'input window, operand 0, single buffered']
    #allocation3 [shape = 's32[1]{0}', space=sflag, size = 0x4, scoped, tag = 'scoped memory for tpu_custom_call.1']
    #allocation4 [shape = 's32[1]{0}', space=sflag, size = 0x4, scoped, tag = 'scoped memory for tpu_custom_call.1']
    #allocation5 [shape = 'u8[16384]{0}', space=vmem, size = 0x4000, scoped, tag = 'input window, operand 1, single buffered']
    #allocation6 [shape = 's32[1]{0}', space=sflag, size = 0x4, scoped, tag = 'scoped memory for tpu_custom_call.1']
    #allocation7 [shape = 'u8[8192]{0}', space=vmem, size = 0x2000, scoped, tag = 'output window, operand 0, single buffered']
    %8 = vsyncpa [#allocation3], 0
    %9 = vsyncpa [#allocation6], 0
    %10 = vsyncpa [#allocation4], 0
    // Predicated region
    $region2: #{tpu_custom_call.1} parent=1 // pred_check
      _
    $region3: #{tpu_custom_call.1} parent=1 // pred_check_branch
      %12 = sbr.rel (0) target = $region5
    $region4: #{tpu_custom_call.1} parent=1 // pred_region
      %s14 = ssub.s32 256, 256
      %15 = vsyncadd [#allocation3], %s14
      %s16 = sshll.u32 [#allocation2], 4
      %s17 = int_to_ptr.vmem [resolvable:$true] %s16
      %22 = dma.hbm_to_vmem [thread:$0]  %s0, 256, %s17, [#allocation3], 128, 128, 8
    $region5: #{tpu_custom_call.1} parent=1 // pred_fallthru
      _
    // Predicated region
    $region6: #{tpu_custom_call.1} parent=1 // pred_check
      _
    $region7: #{tpu_custom_call.1} parent=1 // pred_check_branch
      %24 = sbr.rel (0) target = $region9
    $region8: #{tpu_custom_call.1} parent=1 // pred_region
      %s26 = ssub.s32 512, 512
      %27 = vsyncadd [#allocation6], %s26
      %s28 = sshll.u32 [#allocation5], 4
      %s29 = int_to_ptr.vmem [resolvable:$true] %s28
      %34 = dma.hbm_to_vmem [thread:$0]  %s1, 512, %s29, [#allocation6], 128, 128, 8
    $region9: #{tpu_custom_call.1} parent=1 // pred_fallthru
      _
    // Predicated region
    $region10: #{tpu_custom_call.1} parent=1 // pred_check
      _
    $region11: #{tpu_custom_call.1} parent=1 // pred_check_branch
      %36 = sbr.rel (0) target = $region13
    $region12: #{tpu_custom_call.1} parent=1 // pred_region
      _
    $region13: #{tpu_custom_call.1} parent=1 // pred_fallthru
      _
    // Predicated region
    $region14: #{tpu_custom_call.1} parent=1 // pred_check
      _
    $region15: #{tpu_custom_call.1} parent=1 // pred_check_branch
      %38 = sbr.rel (0) target = $region17
    $region16: #{tpu_custom_call.1} parent=1 // pred_region
      %39 = dma.done [#allocation3], 256
    $region17: #{tpu_custom_call.1} parent=1 // pred_fallthru
      _
    // Predicated region
    $region18: #{tpu_custom_call.1} parent=1 // pred_check
      _
    $region19: #{tpu_custom_call.1} parent=1 // pred_check_branch
      %41 = sbr.rel (0) target = $region21
    $region20: #{tpu_custom_call.1} parent=1 // pred_region
      %42 = dma.done [#allocation6], 512
    $region21: #{tpu_custom_call.1} parent=1 // pred_fallthru
      _
    %v43 = vld [vmem:[#allocation2] sm:$0xff]
    %v44 = vld [vmem:[#allocation2 + $0x8] sm:$0xff]
    %v45 = vld [vmem:[#allocation5] sm:$0xff]
    %v46 = vld [vmem:[#allocation5 + $0x8] sm:$0xff]
    %v47 = vld [vmem:[#allocation5 + $0x10] sm:$0xff]
    %v48 = vld [vmem:[#allocation5 + $0x18] sm:$0xff]
    %v49 = vld [vmem:[%s2] sm:$0x1]
    %v51 = vlaneseq
    %v52 = vshrl.u32 %v51, 7
    %v53 = vsub.s32 0, %v52
    %v54 = vrot.slane %v49, %v53
    %vm56 = vcmask 261120
    %v58 = vsel %vm56, %v43, 0
    %v61 = vsel %vm56, %v44, 0
    %63 = vmatprep.subr.mxu0 0.0
    %64 = vmatpush1.msra.mxu0 %v45
    %65 = vmatprep.subr.mxu0 0.0
    %66 = vmatpush1.msra.mxu0 %v46
    %67 = vmatprep.subr.mxu0 0.0
    %68 = vmatpush1.msra.mxu0 %v47
    %69 = vmatprep.subr.mxu0 0.0
    %70 = vmatpush1.msra.mxu0 %v48
    %71 = vmatprep.subr.mxu0 0.0
    %72 = vmatpush1.msra.mxu0 0.0
    %73 = vmatprep.subr.mxu0 0.0
    %74 = vmatpush1.msra.mxu0 0.0
    %75 = vmatprep.subr.mxu0 0.0
    %76 = vmatpush1.msra.mxu0 0.0
    %77 = vmatprep.subr.mxu0 0.0
    %78 = vmatpush1.msra.mxu0 0.0
    %79 = vmatprep.subr.mxu0 0.0
    %80 = vmatpush1.msra.mxu0 0.0
    %81 = vmatprep.subr.mxu0 0.0
    %82 = vmatpush1.msra.mxu0 0.0
    %83 = vmatprep.subr.mxu0 0.0
    %84 = vmatpush1.msra.mxu0 0.0
    %85 = vmatprep.subr.mxu0 0.0
    %86 = vmatpush1.msra.mxu0 0.0
    %87 = vmatprep.subr.mxu0 0.0
    %88 = vmatpush1.msra.mxu0 0.0
    %89 = vmatprep.subr.mxu0 0.0
    %90 = vmatpush1.msra.mxu0 0.0
    %91 = vmatprep.subr.mxu0 0.0
    %92 = vmatpush1.msra.mxu0 0.0
    %93 = vmatprep.subr.mxu0 0.0
    %94 = vmatpush1.msra.mxu0 0.0
    %95 = vmatprep.subr.mxu0 0.0
    %96 = vmatpush1.msra.mxu0 0.0
    %97 = vmatprep.subr.mxu0 0.0
    %98 = vmatpush1.msra.mxu0 0.0
    %99 = vmatprep.subr.mxu0 0.0
    %100 = vmatpush1.msra.mxu0 0.0
    %101 = vmatprep.subr.mxu0 0.0
    %102 = vmatpush1.msra.mxu0 0.0
    %103 = vmatprep.subr.mxu0 0.0
    %104 = vmatpush1.msra.mxu0 0.0
    %105 = vmatprep.subr.mxu0 0.0
    %106 = vmatpush1.msra.mxu0 0.0
    %107 = vmatprep.subr.mxu0 0.0
    %108 = vmatpush1.msra.mxu0 0.0
    %109 = vmatprep.subr.mxu0 0.0
    %110 = vmatpush1.msra.mxu0 0.0
    %111 = vmatprep.subr.mxu0 0.0
    %112 = vmatpush1.msra.mxu0 0.0
    %113 = vmatprep.subr.mxu0 0.0
    %114 = vmatpush1.msra.mxu0 0.0
    %115 = vmatprep.subr.mxu0 0.0
    %116 = vmatpush1.msra.mxu0 0.0
    %117 = vmatprep.subr.mxu0 0.0
    %118 = vmatpush1.msra.mxu0 0.0
    %119 = vmatprep.subr.mxu0 0.0
    %120 = vmatpush1.msra.mxu0 0.0
    %121 = vmatprep.subr.mxu0 0.0
    %122 = vmatpush1.msra.mxu0 0.0
    %123 = vmatprep.subr.mxu0 0.0
    %124 = vmatpush1.msra.mxu0 0.0
    %125 = vmatprep.subr.mxu0 0.0
    %126 = vmatpush1.msra.mxu0 0.0
    %127 = vmatprep.mubr.f32.mxu0 0.0
    %128 = vmatmul.mubr.f32.gmra.mrb[0].mxu0 %v58
    %v129 = vpop.f32.mrb[0].mxu0
    %v130 = vadd.f32 %v54, %v129
    %v131 = vpop.f32.mrb[0].mxu0
    %132 = vmatprep.mubr.f32.mxu0 0.0
    %133 = vmatmul.mubr.f32.gmra.mrb[0].mxu0 %v61
    %v134 = vpop.f32.mrb[0].mxu0
    %v135 = vadd.f32 %v54, %v134
    %v136 = vpop.f32.mrb[0].mxu0
    %137 = vdwg.mxu0
    %v138 = vtanh.pop %v130
    %v139 = vtanh.pop %v135
    %140 = vst.msk [vmem:[#allocation7] sm:$0xff] %vm56, %v138
    %141 = vst.msk [vmem:[#allocation7 + $0x8] sm:$0xff] %vm56, %v139
    // Predicated region
    $region22: #{tpu_custom_call.1} parent=1 // pred_check
      _
    $region23: #{tpu_custom_call.1} parent=1 // pred_check_branch
      %143 = sbr.rel (0) target = $region25
    $region24: #{tpu_custom_call.1} parent=1 // pred_region
      %s145 = ssub.s32 256, 256
      %146 = vsyncadd [#allocation4], %s145
      %s147 = sshll.u32 [#allocation7], 4
      %s148 = int_to_ptr.vmem [resolvable:$true] %s147
      %153 = dma.vmem_to_hbm [thread:$0]  %s148, 256, %s3, [#allocation4], 128, 128, 8
    $region25: #{tpu_custom_call.1} parent=1 // pred_fallthru
      _
    // Predicated region
    $region26: #{tpu_custom_call.1} parent=1 // pred_check
      _
    $region27: #{tpu_custom_call.1} parent=1 // pred_check_branch
      %155 = sbr.rel (0) target = $region29
    $region28: #{tpu_custom_call.1} parent=1 // pred_region
      %156 = dma.done [#allocation4], 256
    $region29: #{tpu_custom_call.1} parent=1 // pred_fallthru
      _
    %157 = vsyncpa [#allocation3], 1
    %158 = vsyncpa [#allocation6], 1
    %159 = vsyncpa [#allocation4], 1

</llo_original>
